<compile_context>
chip_gen: v7x
topology: tpu7x:2x2x1
jax: 0.10.0
libtpu: 0.0.40
codegen_flags: <defaults>
</compile_context>

<pallas_src>
import functools

import jax
import jax.numpy as jnp
from jax.experimental import pallas as pl
from jax.experimental.pallas import tpu as pltpu

LANE = 128      # TPU lane width: every in-kernel tile is padded to 128 lanes
SUBLANE = 8     # f32 sublane count: batch is padded to a multiple of 8 rows


def dqn_fused_kernel(x_ref, w_ref, b_ref, q_ref, a_ref, *, out_dims):
    """Fused 3-layer MLP (Linear+ReLU, Linear+ReLU, Linear) + greedy argmax.

    x_ref : (Bp, 128)      compute dtype (bf16 default), zero-padded lanes
    w_ref : (3, 128, 128)  compute dtype, zero-padded weight slab [W1; W2; W3]
    b_ref : (3, 128)       f32, zero-padded bias slab [b1; b2; b3]
    q_ref : (Bp, 128)      f32 lane-dense Q output (valid columns = [:out_dims])
    a_ref : (Bp, 128)      int32 greedy action broadcast across lanes (read col 0)
    """
    cdt = w_ref.dtype
    x = x_ref[...]

    # Layer 1: Linear(in_dims, 64) + ReLU   (f32 MXU accumulation)
    h1 = jnp.dot(x, w_ref[0], preferred_element_type=jnp.float32) + b_ref[0:1, :]
    h1 = jnp.maximum(h1, 0.0)

    # Layer 2: Linear(64, 64) + ReLU
    h2 = jnp.dot(h1.astype(cdt), w_ref[1], preferred_element_type=jnp.float32) + b_ref[1:2, :]
    h2 = jnp.maximum(h2, 0.0)

    # Layer 3: Linear(64, out_dims)
    q = jnp.dot(h2.astype(cdt), w_ref[2], preferred_element_type=jnp.float32) + b_ref[2:3, :]

    # Full-width (lane-dense) store of the padded Q tile.
    q_ref[...] = q

    # Fused greedy action selection: first index of the max over the valid lanes.
    lane = jax.lax.broadcasted_iota(jnp.int32, q.shape, 1)
    q_masked = jnp.where(lane < out_dims, q, jnp.full_like(q, -jnp.inf))
    q_max = jnp.max(q_masked, axis=-1, keepdims=True)
    cand = jnp.where(q_masked == q_max, lane, jnp.full_like(lane, LANE))
    act = jnp.min(cand, axis=-1, keepdims=True)               # (Bp, 1) int32
    a_ref[...] = jnp.broadcast_to(act, a_ref.shape)            # lane-dense store


def pack_params(params, compute_dtype=jnp.bfloat16):
    """Pack the 6 PyTorch-layout tensors into two padded, lane-dense slabs.

    Weights are stored transposed vs PyTorch: W has shape (in_features, out_features),
    so the kernel computes y = x @ W + b. Use compute_dtype=jnp.float32 on v5e.
    Returns (w_slab, b_slab, in_dims, out_dims).
    """
    w1, w2, w3 = params["w1"], params["w2"], params["w3"]
    b1, b2, b3 = params["b1"], params["b2"], params["b3"]
    in_dims, hidden = w1.shape
    out_dims = w3.shape[1]
    assert max(in_dims, hidden, out_dims) <= LANE, "dims must fit a single 128-lane tile"

    def pad_w(w):
        return jnp.zeros((LANE, LANE), jnp.float32).at[: w.shape[0], : w.shape[1]].set(w)

    def pad_b(b):
        b = jnp.asarray(b, jnp.float32).reshape(-1)
        return jnp.zeros((LANE,), jnp.float32).at[: b.shape[0]].set(b)

    w_slab = jnp.stack([pad_w(w1), pad_w(w2), pad_w(w3)]).astype(compute_dtype)  # (3,128,128)
    b_slab = jnp.stack([pad_b(b1), pad_b(b2), pad_b(b3)])                        # (3,128) f32
    return w_slab, b_slab, int(in_dims), int(out_dims)


@functools.partial(jax.jit, static_argnames=("out_dims", "return_action"))
def dqn_forward(x, w_slab, b_slab, out_dims, return_action=False):
    """x: (B, in_dims) f32. Returns Q (B, out_dims) and optionally the greedy action."""
    B, in_dims = x.shape
    cdt = w_slab.dtype
    Bp = max(SUBLANE, ((B + SUBLANE - 1) // SUBLANE) * SUBLANE)

    # Lane-dense, sublane-aligned activation tile (zero padding is exact: relu(0)=0).
    xp = jnp.zeros((Bp, LANE), cdt).at[:B, :in_dims].set(x.astype(cdt))

    vmem = pl.BlockSpec(memory_space=pltpu.MemorySpace.VMEM)
    q_pad, act = pl.pallas_call(
        functools.partial(dqn_fused_kernel, out_dims=out_dims),
        out_shape=(
            jax.ShapeDtypeStruct((Bp, LANE), jnp.float32),
            jax.ShapeDtypeStruct((Bp, LANE), jnp.int32),
        ),
        in_specs=[vmem, vmem, vmem],
        out_specs=(vmem, vmem),
    )(xp, w_slab, b_slab)

    q = q_pad[:B, :out_dims]
    if return_action:
        return q, act[:B, 0]
    return q


def init_params(key, in_dims, out_dims, hidden=64):
    """Deterministic init mimicking PyTorch nn.Linear default (uniform +/- 1/sqrt(fan_in))."""
    ks = jax.random.split(key, 6)

    def lin(kw, kb, fan_in, fan_out):
        bound = 1.0 / jnp.sqrt(fan_in)
        w = jax.random.uniform(kw, (fan_in, fan_out), jnp.float32, -bound, bound)
        b = jax.random.uniform(kb, (1, fan_out), jnp.float32, -bound, bound)
        return w, b

    w1, b1 = lin(ks[0], ks[1], in_dims, hidden)
    w2, b2 = lin(ks[2], ks[3], hidden, hidden)
    w3, b3 = lin(ks[4], ks[5], hidden, out_dims)
    return dict(w1=w1, b1=b1, w2=w2, b2=b2, w3=w3, b3=b3)


def dqn_forward_ref(x, p, compute_dtype=jnp.bfloat16):
    """Pure-JAX reference using the same compute dtype + f32 accumulation as the kernel."""
    f32 = jnp.float32
    h1 = jnp.maximum(
        jnp.dot(x.astype(compute_dtype), p["w1"].astype(compute_dtype),
                preferred_element_type=f32) + p["b1"], 0.0)
    h2 = jnp.maximum(
        jnp.dot(h1.astype(compute_dtype), p["w2"].astype(compute_dtype),
                preferred_element_type=f32) + p["b2"], 0.0)
    return jnp.dot(h2.astype(compute_dtype), p["w3"].astype(compute_dtype),
                   preferred_element_type=f32) + p["b3"]


if __name__ == "__main__":
    key = jax.random.PRNGKey(0)
    k_param, k_x = jax.random.split(key)

    in_dims, out_dims, batch = 4, 2, 8  # CartPole: 4 observations, 2 actions
    params = init_params(k_param, in_dims, out_dims)
    w_slab, b_slab, in_dims_p, out_dims_p = pack_params(params)  # bf16 MXU path

    x = jax.random.normal(k_x, (batch, in_dims), jnp.float32)

    q, act = dqn_forward(x, w_slab, b_slab, out_dims_p, return_action=True)
    q = jax.block_until_ready(q)
    act = jax.block_until_ready(act)

    ref = dqn_forward_ref(x, params, compute_dtype=w_slab.dtype)
    assert q.shape == (batch, out_dims)
    assert act.shape == (batch,)
    assert jnp.allclose(q, ref, atol=1e-4, rtol=1e-4), "Q mismatch vs pure-JAX reference"
    assert jnp.array_equal(act, jnp.argmax(q, axis=-1)), "fused greedy argmax mismatch"

    print("KERNEL_OK")
</pallas_src>

<mosaic_0001>
module attributes {stable_mosaic.version = 11 : i64} {
  func.func @dqn_fused_kernel(%arg0: memref<8x128xbf16, #tpu.memory_space<vmem>>, %arg1: memref<3x128x128xbf16, #tpu.memory_space<vmem>>, %arg2: memref<3x128xf32, #tpu.memory_space<vmem>>, %arg3: memref<8x128xf32, #tpu.memory_space<vmem>>, %arg4: memref<8x128xi32, #tpu.memory_space<vmem>>) attributes {dimension_semantics = [], scalar_prefetch = 0 : i64, scratch_operands = 0 : i64, tpu.core_type = #tpu.core_type<tc>} {
    %c0 = arith.constant 0 : index
    %c0_0 = arith.constant 0 : index
    %0 = vector.load %arg0[%c0, %c0_0] : memref<8x128xbf16, #tpu.memory_space<vmem>>, vector<8x128xbf16>
    %c0_1 = arith.constant 0 : index
    %c0_2 = arith.constant 0 : index
    %c0_3 = arith.constant 0 : index
    %1 = vector.load %arg1[%c0_1, %c0_2, %c0_3] : memref<3x128x128xbf16, #tpu.memory_space<vmem>>, vector<1x128x128xbf16>
    %2 = vector.shape_cast %1 : vector<1x128x128xbf16> to vector<128x128xbf16>
    %cst = arith.constant dense<0.000000e+00> : vector<8x128xf32>
    %3 = tpu.matmul %0, %2, %cst {dimension_numbers = #tpu.dot_dimension_numbers<[1], [0], [0], [1], [0, 0, 1, 1], [], []>} : vector<8x128xbf16>, vector<128x128xbf16>, vector<8x128xf32> -> vector<8x128xf32>
    %c0_4 = arith.constant 0 : index
    %c0_5 = arith.constant 0 : index
    %4 = vector.load %arg2[%c0_4, %c0_5] : memref<3x128xf32, #tpu.memory_space<vmem>>, vector<1x128xf32>
    %5 = vector.broadcast %4 : vector<1x128xf32> to vector<8x128xf32>
    %6 = arith.addf %3, %5 : vector<8x128xf32>
    %cst_6 = arith.constant 0.000000e+00 : f32
    %7 = vector.broadcast %cst_6 : f32 to vector<8x128xf32>
    %8 = arith.maximumf %6, %7 : vector<8x128xf32>
    %9 = arith.truncf %8 : vector<8x128xf32> to vector<8x128xbf16>
    %c1 = arith.constant 1 : index
    %c0_7 = arith.constant 0 : index
    %c0_8 = arith.constant 0 : index
    %10 = vector.load %arg1[%c1, %c0_7, %c0_8] : memref<3x128x128xbf16, #tpu.memory_space<vmem>>, vector<1x128x128xbf16>
    %11 = vector.shape_cast %10 : vector<1x128x128xbf16> to vector<128x128xbf16>
    %cst_9 = arith.constant dense<0.000000e+00> : vector<8x128xf32>
    %12 = tpu.matmul %9, %11, %cst_9 {dimension_numbers = #tpu.dot_dimension_numbers<[1], [0], [0], [1], [0, 0, 1, 1], [], []>} : vector<8x128xbf16>, vector<128x128xbf16>, vector<8x128xf32> -> vector<8x128xf32>
    %c1_10 = arith.constant 1 : index
    %c0_11 = arith.constant 0 : index
    %13 = vector.load %arg2[%c1_10, %c0_11] : memref<3x128xf32, #tpu.memory_space<vmem>>, vector<1x128xf32>
    %14 = vector.broadcast %13 : vector<1x128xf32> to vector<8x128xf32>
    %15 = arith.addf %12, %14 : vector<8x128xf32>
    %cst_12 = arith.constant 0.000000e+00 : f32
    %16 = vector.broadcast %cst_12 : f32 to vector<8x128xf32>
    %17 = arith.maximumf %15, %16 : vector<8x128xf32>
    %18 = arith.truncf %17 : vector<8x128xf32> to vector<8x128xbf16>
    %c2 = arith.constant 2 : index
    %c0_13 = arith.constant 0 : index
    %c0_14 = arith.constant 0 : index
    %19 = vector.load %arg1[%c2, %c0_13, %c0_14] : memref<3x128x128xbf16, #tpu.memory_space<vmem>>, vector<1x128x128xbf16>
    %20 = vector.shape_cast %19 : vector<1x128x128xbf16> to vector<128x128xbf16>
    %cst_15 = arith.constant dense<0.000000e+00> : vector<8x128xf32>
    %21 = tpu.matmul %18, %20, %cst_15 {dimension_numbers = #tpu.dot_dimension_numbers<[1], [0], [0], [1], [0, 0, 1, 1], [], []>} : vector<8x128xbf16>, vector<128x128xbf16>, vector<8x128xf32> -> vector<8x128xf32>
    %c2_16 = arith.constant 2 : index
    %c0_17 = arith.constant 0 : index
    %22 = vector.load %arg2[%c2_16, %c0_17] : memref<3x128xf32, #tpu.memory_space<vmem>>, vector<1x128xf32>
    %23 = vector.broadcast %22 : vector<1x128xf32> to vector<8x128xf32>
    %24 = arith.addf %21, %23 : vector<8x128xf32>
    %c0_18 = arith.constant 0 : index
    %c0_19 = arith.constant 0 : index
    %25 = vector.load %arg3[%c0_18, %c0_19] : memref<8x128xf32, #tpu.memory_space<vmem>>, vector<8x128xf32>
    tpu.vector_store %arg3[%c0_18, %c0_19], %24 {strides = array<i32>} : memref<8x128xf32, #tpu.memory_space<vmem>>, vector<8x128xf32>,
    %26 = tpu.iota {dimensions = array<i32: 1>} : vector<8x128xi32>
    %c2_i32 = arith.constant 2 : i32
    %27 = vector.broadcast %c2_i32 : i32 to vector<8x128xi32>
    %28 = arith.cmpi slt, %26, %27 : vector<8x128xi32>
    %cst_20 = arith.constant 0xFF800000 : f32
    %29 = vector.broadcast %cst_20 : f32 to vector<8x128xf32>
    %30 = arith.select %28, %24, %29 : vector<8x128xi1>, vector<8x128xf32>
    %cst_21 = arith.constant dense<0xFF800000> : vector<8xf32>
    %31 = vector.multi_reduction <maximumf>, %30, %cst_21 [1] : vector<8x128xf32> to vector<8xf32>
    %32 = vector.shape_cast %31 : vector<8xf32> to vector<8x1xf32>
    %33 = vector.broadcast %32 : vector<8x1xf32> to vector<8x128xf32>
    %34 = arith.cmpf oeq, %30, %33 : vector<8x128xf32>
    %c128_i32 = arith.constant 128 : i32
    %35 = vector.broadcast %c128_i32 : i32 to vector<8x128xi32>
    %36 = arith.select %34, %26, %35 : vector<8x128xi1>, vector<8x128xi32>
    %cst_22 = arith.constant dense<2147483647> : vector<8xi32>
    %37 = vector.multi_reduction <minsi>, %36, %cst_22 [1] : vector<8x128xi32> to vector<8xi32>
    %38 = vector.shape_cast %37 : vector<8xi32> to vector<8x1xi32>
    %39 = vector.shape_cast %38 : vector<8x1xi32> to vector<8x1xi32>
    %40 = vector.broadcast %39 : vector<8x1xi32> to vector<8x128xi32>
    %c0_23 = arith.constant 0 : index
    %c0_24 = arith.constant 0 : index
    %41 = vector.load %arg4[%c0_23, %c0_24] : memref<8x128xi32, #tpu.memory_space<vmem>>, vector<8x128xi32>
    tpu.vector_store %arg4[%c0_23, %c0_24], %40 {strides = array<i32>} : memref<8x128xi32, #tpu.memory_space<vmem>>, vector<8x128xi32>,
    return
  }
}

</mosaic_0001>

<llo_original>
// kernel: dqn_forward.1
$region0: #{dqn_forward.1}
  #allocation0 [shape = 'u32[]', space=smem, size = 0x4, offset = 0x4, fixed_abs, tag = 'smem constant byte address 0x4 - core index']
  #allocation1 [shape = 'u32[144,128]{1,0:T(1,128)}', space=vmem, size = 0x12000, scoped, tag = 'internal scratch']
  %s0 = inlined_call_operand.vmem [shape: bf16[8,128], index: 0, kind: input, shape index: {}]
  %s1 = inlined_call_operand.hbm [shape: bf16[3,128,128], index: 1, kind: input, shape index: {}]
  %s2 = inlined_call_operand.vmem [shape: f32[3,128], index: 2, kind: input, shape index: {}]
  %s3 = inlined_call_operand.vmem [shape: f32[8,128], index: 3, kind: output, shape index: {0}]
  %s4 = inlined_call_operand.vmem [shape: s32[8,128], index: 4, kind: output, shape index: {1}]
  %5 = xla_tuple %s3, %s4
  %s6 = sld [smem:[#allocation0]]
  $region34: #{dqn_forward.1} parent=0
    _
  %s8 = ssub.s32 1, %s6
  %s9 = scalar_select 0, %s8, %s6
  $region1: #{dqn_forward.1} parent=0
    #allocation2 [shape = 'u8[98304]{0}', space=vmem, size = 0x18000, scoped, tag = 'input window, operand 1, single buffered']
    #allocation3 [shape = 's32[1]{0}', space=sflag, size = 0x4, scoped, tag = 'scoped memory for dqn_forward.1']
    %10 = vsyncpa [#allocation3], 0
    // Predicated region
    $region2: #{dqn_forward.1} parent=1 // pred_check
      _
    $region3: #{dqn_forward.1} parent=1 // pred_check_branch
      %12 = sbr.rel (0) target = $region5
    $region4: #{dqn_forward.1} parent=1 // pred_region
      _
    $region5: #{dqn_forward.1} parent=1 // pred_fallthru
      _
    // Predicated region
    $region6: #{dqn_forward.1} parent=1 // pred_check
      _
    $region7: #{dqn_forward.1} parent=1 // pred_check_branch
      %14 = sbr.rel (0) target = $region9
    $region8: #{dqn_forward.1} parent=1 // pred_region
      %s16 = ssub.s32 3072, 3072
      %17 = vsyncadd [#allocation3], %s16
      %s18 = sshll.u32 [#allocation2], 4
      %s19 = int_to_ptr.vmem [resolvable:$true] %s18
      %24 = dma.hbm_to_vmem [thread:$0]  %s1, 3072, %s19, [#allocation3], 64, 64, 4
    $region9: #{dqn_forward.1} parent=1 // pred_fallthru
      _
    // Predicated region
    $region10: #{dqn_forward.1} parent=1 // pred_check
      _
    $region11: #{dqn_forward.1} parent=1 // pred_check_branch
      %26 = sbr.rel (0) target = $region13
    $region12: #{dqn_forward.1} parent=1 // pred_region
      _
    $region13: #{dqn_forward.1} parent=1 // pred_fallthru
      _
    // Predicated region
    $region14: #{dqn_forward.1} parent=1 // pred_check
      _
    $region15: #{dqn_forward.1} parent=1 // pred_check_branch
      %28 = sbr.rel (0) target = $region17
    $region16: #{dqn_forward.1} parent=1 // pred_region
      %29 = dma.done [#allocation3], 3072
    $region17: #{dqn_forward.1} parent=1 // pred_fallthru
      _
    %v31 = vld [vmem:[%s0] sm:$0xf]
    %v32 = vld [vmem:[#allocation2] sm:$0xf]
    %v33 = vld [vmem:[#allocation2 + $0x4] sm:$0xf]
    %v34 = vld [vmem:[#allocation2 + $0x8] sm:$0xf]
    %v35 = vld [vmem:[#allocation2 + $0xc] sm:$0xf]
    %v36 = vld [vmem:[#allocation2 + $0x10] sm:$0xf]
    %v37 = vld [vmem:[#allocation2 + $0x14] sm:$0xf]
    %v38 = vld [vmem:[#allocation2 + $0x18] sm:$0xf]
    %v39 = vld [vmem:[#allocation2 + $0x1c] sm:$0xf]
    %v40 = vld [vmem:[#allocation2 + $0x20] sm:$0xf]
    %v41 = vld [vmem:[#allocation2 + $0x24] sm:$0xf]
    %v42 = vld [vmem:[#allocation2 + $0x28] sm:$0xf]
    %v43 = vld [vmem:[#allocation2 + $0x2c] sm:$0xf]
    %v44 = vld [vmem:[#allocation2 + $0x30] sm:$0xf]
    %v45 = vld [vmem:[#allocation2 + $0x34] sm:$0xf]
    %v46 = vld [vmem:[#allocation2 + $0x38] sm:$0xf]
    %v47 = vld [vmem:[#allocation2 + $0x3c] sm:$0xf]
    %v48 = vld [vmem:[%s2] sm:$0x1]
    %v49 = vlaneseq
    %v50 = vshrl.u32 %v49, 7
    %v51 = vsub.s32 0, %v50
    %v52 = vrot.slane %v48, %v51
    %v69 = vunpack.c.l.b16 %v32
    %v70 = vunpack.c.l.b16 %v33
    %v71 = vunpack.c.l.b16 %v34
    %v72 = vunpack.c.l.b16 %v35
    %v73 = vunpack.c.l.b16 %v36
    %v74 = vunpack.c.l.b16 %v37
    %v75 = vunpack.c.l.b16 %v38
    %v76 = vunpack.c.l.b16 %v39
    %v77 = vunpack.c.l.b16 %v40
    %v78 = vunpack.c.l.b16 %v41
    %v79 = vunpack.c.l.b16 %v42
    %v80 = vunpack.c.l.b16 %v43
    %v81 = vunpack.c.l.b16 %v44
    %v82 = vunpack.c.l.b16 %v45
    %v83 = vunpack.c.l.b16 %v46
    %v84 = vunpack.c.l.b16 %v47
    %v85 = vpack.c.b16 %v70, %v69
    %v86 = vpack.c.b16 %v72, %v71
    %v87 = vpack.c.b16 %v74, %v73
    %v88 = vpack.c.b16 %v76, %v75
    %v89 = vpack.c.b16 %v78, %v77
    %v90 = vpack.c.b16 %v80, %v79
    %v91 = vpack.c.b16 %v82, %v81
    %v92 = vpack.c.b16 %v84, %v83
    %101 = vmatprep.subr.bf16.mxu0 0
    %102 = vmatpush1.bf16.msra.mxu0 %v85
    %103 = vmatprep.subr.bf16.mxu0 0
    %104 = vmatpush1.bf16.msra.mxu0 %v86
    %105 = vmatprep.subr.bf16.mxu0 0
    %106 = vmatpush1.bf16.msra.mxu0 %v87
    %107 = vmatprep.subr.bf16.mxu0 0
    %108 = vmatpush1.bf16.msra.mxu0 %v88
    %109 = vmatprep.subr.bf16.mxu0 0
    %110 = vmatpush1.bf16.msra.mxu0 %v89
    %111 = vmatprep.subr.bf16.mxu0 0
    %112 = vmatpush1.bf16.msra.mxu0 %v90
    %113 = vmatprep.subr.bf16.mxu0 0
    %114 = vmatpush1.bf16.msra.mxu0 %v91
    %115 = vmatprep.subr.bf16.mxu0 0
    %116 = vmatpush1.bf16.msra.mxu0 %v92
    %117 = vmatprep.subr.bf16.mxu0 0
    %118 = vmatpush1.bf16.msra.mxu0 0
    %119 = vmatprep.subr.bf16.mxu0 0
    %120 = vmatpush1.bf16.msra.mxu0 0
    %121 = vmatprep.subr.bf16.mxu0 0
    %122 = vmatpush1.bf16.msra.mxu0 0
    %123 = vmatprep.subr.bf16.mxu0 0
    %124 = vmatpush1.bf16.msra.mxu0 0
    %125 = vmatprep.subr.bf16.mxu0 0
    %126 = vmatpush1.bf16.msra.mxu0 0
    %127 = vmatprep.subr.bf16.mxu0 0
    %128 = vmatpush1.bf16.msra.mxu0 0
    %129 = vmatprep.subr.bf16.mxu0 0
    %130 = vmatpush1.bf16.msra.mxu0 0
    %131 = vmatprep.subr.bf16.mxu0 0
    %132 = vmatpush1.bf16.msra.mxu0 0
    %133 = vmatprep.mubr.bf16.mxu0 0
    %134 = vmatmul.mubr.bf16.gmra.mrb[0].mxu0 %v31
    %v135 = vpop.f32.mrb[0].mxu0
    %v136 = vadd.f32 %v52, %v135
    %v137 = vpop.f32.mrb[0].mxu0
    %v138 = vpop.f32.mrb[0].mxu0
    %v139 = vpop.f32.mrb[0].mxu0
    %140 = vdwg.mxu0
    %v141 = vmax.f32 %v136, 0.0
    %v142 = vpack.c.bf16 %v141, %v141
    %s143 = scalar_lea.vmem [#allocation2], 64
    %v144 = vld [vmem:[%s143] sm:$0xf]
    %v145 = vld [vmem:[%s143 + $0x4] sm:$0xf]
    %v146 = vld [vmem:[%s143 + $0x8] sm:$0xf]
    %v147 = vld [vmem:[%s143 + $0xc] sm:$0xf]
    %v148 = vld [vmem:[%s143 + $0x10] sm:$0xf]
    %v149 = vld [vmem:[%s143 + $0x14] sm:$0xf]
    %v150 = vld [vmem:[%s143 + $0x18] sm:$0xf]
    %v151 = vld [vmem:[%s143 + $0x1c] sm:$0xf]
    %v152 = vld [vmem:[%s143 + $0x20] sm:$0xf]
    %v153 = vld [vmem:[%s143 + $0x24] sm:$0xf]
    %v154 = vld [vmem:[%s143 + $0x28] sm:$0xf]
    %v155 = vld [vmem:[%s143 + $0x2c] sm:$0xf]
    %v156 = vld [vmem:[%s143 + $0x30] sm:$0xf]
    %v157 = vld [vmem:[%s143 + $0x34] sm:$0xf]
    %v158 = vld [vmem:[%s143 + $0x38] sm:$0xf]
    %v159 = vld [vmem:[%s143 + $0x3c] sm:$0xf]
    %v160 = vld [vmem:[%s2 + $0x1] sm:$0x1]
    %v161 = vlaneseq
    %v162 = vshrl.u32 %v161, 7
    %v163 = vsub.s32 0, %v162
    %v164 = vrot.slane %v160, %v163
    %v181 = vunpack.c.l.b16 %v144
    %v182 = vunpack.c.l.b16 %v145
    %v183 = vunpack.c.l.b16 %v146
    %v184 = vunpack.c.l.b16 %v147
    %v185 = vunpack.c.l.b16 %v148
    %v186 = vunpack.c.l.b16 %v149
    %v187 = vunpack.c.l.b16 %v150
    %v188 = vunpack.c.l.b16 %v151
    %v189 = vunpack.c.l.b16 %v152
    %v190 = vunpack.c.l.b16 %v153
    %v191 = vunpack.c.l.b16 %v154
    %v192 = vunpack.c.l.b16 %v155
    %v193 = vunpack.c.l.b16 %v156
    %v194 = vunpack.c.l.b16 %v157
    %v195 = vunpack.c.l.b16 %v158
    %v196 = vunpack.c.l.b16 %v159
    %v197 = vpack.c.b16 %v182, %v181
    %v198 = vpack.c.b16 %v184, %v183
    %v199 = vpack.c.b16 %v186, %v185
    %v200 = vpack.c.b16 %v188, %v187
    %v201 = vpack.c.b16 %v190, %v189
    %v202 = vpack.c.b16 %v192, %v191
    %v203 = vpack.c.b16 %v194, %v193
    %v204 = vpack.c.b16 %v196, %v195
    %213 = vmatprep.subr.bf16.mxu0 0
    %214 = vmatpush1.bf16.msra.mxu0 %v197
    %215 = vmatprep.subr.bf16.mxu0 0
    %216 = vmatpush1.bf16.msra.mxu0 %v198
    %217 = vmatprep.subr.bf16.mxu0 0
    %218 = vmatpush1.bf16.msra.mxu0 %v199
    %219 = vmatprep.subr.bf16.mxu0 0
    %220 = vmatpush1.bf16.msra.mxu0 %v200
    %221 = vmatprep.subr.bf16.mxu0 0
    %222 = vmatpush1.bf16.msra.mxu0 %v201
    %223 = vmatprep.subr.bf16.mxu0 0
    %224 = vmatpush1.bf16.msra.mxu0 %v202
    %225 = vmatprep.subr.bf16.mxu0 0
    %226 = vmatpush1.bf16.msra.mxu0 %v203
    %227 = vmatprep.subr.bf16.mxu0 0
    %228 = vmatpush1.bf16.msra.mxu0 %v204
    %229 = vmatprep.subr.bf16.mxu0 0
    %230 = vmatpush1.bf16.msra.mxu0 0
    %231 = vmatprep.subr.bf16.mxu0 0
    %232 = vmatpush1.bf16.msra.mxu0 0
    %233 = vmatprep.subr.bf16.mxu0 0
    %234 = vmatpush1.bf16.msra.mxu0 0
    %235 = vmatprep.subr.bf16.mxu0 0
    %236 = vmatpush1.bf16.msra.mxu0 0
    %237 = vmatprep.subr.bf16.mxu0 0
    %238 = vmatpush1.bf16.msra.mxu0 0
    %239 = vmatprep.subr.bf16.mxu0 0
    %240 = vmatpush1.bf16.msra.mxu0 0
    %241 = vmatprep.subr.bf16.mxu0 0
    %242 = vmatpush1.bf16.msra.mxu0 0
    %243 = vmatprep.subr.bf16.mxu0 0
    %244 = vmatpush1.bf16.msra.mxu0 0
    %245 = vmatprep.mubr.bf16.mxu0 0
    %246 = vmatmul.mubr.bf16.gmra.mrb[0].mxu0 %v142
    %v247 = vpop.f32.mrb[0].mxu0
    %v248 = vadd.f32 %v164, %v247
    %v249 = vpop.f32.mrb[0].mxu0
    %v250 = vpop.f32.mrb[0].mxu0
    %v251 = vpop.f32.mrb[0].mxu0
    %252 = vdwg.mxu0
    %v253 = vmax.f32 %v248, 0.0
    %v254 = vpack.c.bf16 %v253, %v253
    %s255 = scalar_lea.vmem [#allocation2], 128
    %v256 = vld [vmem:[%s255] sm:$0xf]
    %v257 = vld [vmem:[%s255 + $0x4] sm:$0xf]
    %v258 = vld [vmem:[%s255 + $0x8] sm:$0xf]
    %v259 = vld [vmem:[%s255 + $0xc] sm:$0xf]
    %v260 = vld [vmem:[%s255 + $0x10] sm:$0xf]
    %v261 = vld [vmem:[%s255 + $0x14] sm:$0xf]
    %v262 = vld [vmem:[%s255 + $0x18] sm:$0xf]
    %v263 = vld [vmem:[%s255 + $0x1c] sm:$0xf]
    %v264 = vld [vmem:[%s255 + $0x20] sm:$0xf]
    %v265 = vld [vmem:[%s255 + $0x24] sm:$0xf]
    %v266 = vld [vmem:[%s255 + $0x28] sm:$0xf]
    %v267 = vld [vmem:[%s255 + $0x2c] sm:$0xf]
    %v268 = vld [vmem:[%s255 + $0x30] sm:$0xf]
    %v269 = vld [vmem:[%s255 + $0x34] sm:$0xf]
    %v270 = vld [vmem:[%s255 + $0x38] sm:$0xf]
    %v271 = vld [vmem:[%s255 + $0x3c] sm:$0xf]
    %v272 = vld [vmem:[%s2 + $0x2] sm:$0x1]
    %v273 = vlaneseq
    %v274 = vshrl.u32 %v273, 7
    %v275 = vsub.s32 0, %v274
    %v276 = vrot.slane %v272, %v275
    %v293 = vunpack.c.l.b16 %v256
    %v294 = vunpack.c.l.b16 %v257
    %v295 = vunpack.c.l.b16 %v258
    %v296 = vunpack.c.l.b16 %v259
    %v297 = vunpack.c.l.b16 %v260
    %v298 = vunpack.c.l.b16 %v261
    %v299 = vunpack.c.l.b16 %v262
    %v300 = vunpack.c.l.b16 %v263
    %v301 = vunpack.c.l.b16 %v264
    %v302 = vunpack.c.l.b16 %v265
    %v303 = vunpack.c.l.b16 %v266
    %v304 = vunpack.c.l.b16 %v267
    %v305 = vunpack.c.l.b16 %v268
    %v306 = vunpack.c.l.b16 %v269
    %v307 = vunpack.c.l.b16 %v270
    %v308 = vunpack.c.l.b16 %v271
    %v309 = vpack.c.b16 %v294, %v293
    %v310 = vpack.c.b16 %v296, %v295
    %v311 = vpack.c.b16 %v298, %v297
    %v312 = vpack.c.b16 %v300, %v299
    %v313 = vpack.c.b16 %v302, %v301
    %v314 = vpack.c.b16 %v304, %v303
    %v315 = vpack.c.b16 %v306, %v305
    %v316 = vpack.c.b16 %v308, %v307
    %325 = vmatprep.subr.bf16.mxu0 0
    %326 = vmatpush1.bf16.msra.mxu0 %v309
    %327 = vmatprep.subr.bf16.mxu0 0
    %328 = vmatpush1.bf16.msra.mxu0 %v310
    %329 = vmatprep.subr.bf16.mxu0 0
    %330 = vmatpush1.bf16.msra.mxu0 %v311
    %331 = vmatprep.subr.bf16.mxu0 0
    %332 = vmatpush1.bf16.msra.mxu0 %v312
    %333 = vmatprep.subr.bf16.mxu0 0
    %334 = vmatpush1.bf16.msra.mxu0 %v313
    %335 = vmatprep.subr.bf16.mxu0 0
    %336 = vmatpush1.bf16.msra.mxu0 %v314
    %337 = vmatprep.subr.bf16.mxu0 0
    %338 = vmatpush1.bf16.msra.mxu0 %v315
    %339 = vmatprep.subr.bf16.mxu0 0
    %340 = vmatpush1.bf16.msra.mxu0 %v316
    %341 = vmatprep.subr.bf16.mxu0 0
    %342 = vmatpush1.bf16.msra.mxu0 0
    %343 = vmatprep.subr.bf16.mxu0 0
    %344 = vmatpush1.bf16.msra.mxu0 0
    %345 = vmatprep.subr.bf16.mxu0 0
    %346 = vmatpush1.bf16.msra.mxu0 0
    %347 = vmatprep.subr.bf16.mxu0 0
    %348 = vmatpush1.bf16.msra.mxu0 0
    %349 = vmatprep.subr.bf16.mxu0 0
    %350 = vmatpush1.bf16.msra.mxu0 0
    %351 = vmatprep.subr.bf16.mxu0 0
    %352 = vmatpush1.bf16.msra.mxu0 0
    %353 = vmatprep.subr.bf16.mxu0 0
    %354 = vmatpush1.bf16.msra.mxu0 0
    %355 = vmatprep.subr.bf16.mxu0 0
    %356 = vmatpush1.bf16.msra.mxu0 0
    %357 = vmatprep.mubr.bf16.mxu0 0
    %358 = vmatmul.mubr.bf16.gmra.mrb[0].mxu0 %v254
    %v359 = vpop.f32.mrb[0].mxu0
    %v360 = vadd.f32 %v276, %v359
    %v361 = vpop.f32.mrb[0].mxu0
    %v362 = vpop.f32.mrb[0].mxu0
    %v363 = vpop.f32.mrb[0].mxu0
    %364 = vdwg.mxu0
    %365 = vst [vmem:[%s3] sm:$0xff] %v360
    %v366 = vlaneseq
    %v367 = vand.u32 %v366, 127
    %vm368 = vcmp.lt.s32.totalorder %v367, 2
    %v369 = vsel %vm368, %v360, -inf
    %370 = vmax.xlane.f32.xlu0 %v369
    %v371 = vpop.xlane.xlu0 %370
    %vm372 = vcmp.eq.f32.partialorder %v369, %v371
    %v373 = vsel %vm372, %v367, 128
    %v374 = vand.u32 %v373, 65535
    %v375 = vshra.s32 %v373, 16
    %v376 = vcvt.s32.f32 %v374
    %v377 = vcvt.s32.f32 %v375
    %378 = vmin.xlane.f32.xlu0 %v377
    %v379 = vpop.xlane.xlu0 %378
    %vm380 = vcmp.eq.f32.partialorder %v377, %v379
    %v381 = vsel %vm380, %v376, inf
    %382 = vmin.xlane.f32.xlu0 %v381
    %v383 = vpop.xlane.xlu0 %382
    %v384 = vcvt.f32.s32 %v383
    %v385 = vcvt.f32.s32 %v379
    %v386 = vshll.u32 %v385, 16
    %v387 = vadd.s32 %v386, %v384
    %388 = vst [vmem:[%s4] sm:$0xff] %v387
    // Predicated region
    $region18: #{dqn_forward.1} parent=1 // pred_check
      _
    $region19: #{dqn_forward.1} parent=1 // pred_check_branch
      %390 = sbr.rel (0) target = $region21
    $region20: #{dqn_forward.1} parent=1 // pred_region
      _
    $region21: #{dqn_forward.1} parent=1 // pred_fallthru
      _
    // Predicated region
    $region22: #{dqn_forward.1} parent=1 // pred_check
      _
    $region23: #{dqn_forward.1} parent=1 // pred_check_branch
      %392 = sbr.rel (0) target = $region25
    $region24: #{dqn_forward.1} parent=1 // pred_region
      _
    $region25: #{dqn_forward.1} parent=1 // pred_fallthru
      _
    // Predicated region
    $region26: #{dqn_forward.1} parent=1 // pred_check
      _
    $region27: #{dqn_forward.1} parent=1 // pred_check_branch
      %394 = sbr.rel (0) target = $region29
    $region28: #{dqn_forward.1} parent=1 // pred_region
      _
    $region29: #{dqn_forward.1} parent=1 // pred_fallthru
      _
    // Predicated region
    $region30: #{dqn_forward.1} parent=1 // pred_check
      _
    $region31: #{dqn_forward.1} parent=1 // pred_check_branch
      %396 = sbr.rel (0) target = $region33
    $region32: #{dqn_forward.1} parent=1 // pred_region
      _
    $region33: #{dqn_forward.1} parent=1 // pred_fallthru
      _
    %397 = vsyncpa [#allocation3], 1

</llo_original>
